<compile_context>
chip_gen: v7x
topology: tpu7x:2x2x1
jax: 0.10.0
libtpu: 0.0.40
codegen_flags: <defaults>
</compile_context>

<pallas_src>
import jax
import jax.numpy as jnp
from jax.experimental import pallas as pl
from jax.experimental.pallas import tpu as pltpu

LANE = 128
MAX_TM = 1024        # max rows per grid step (1024*128*4B = 512 KiB per input)
NUM_PARTIALS = 2     # parallel partial accumulators (enables 2-TC split on v7x)


def _cdiv(a, b):
    return -(-a // b)


def dice_loss(inputs, targets, smooth=1.0, use_sigmoid=True):
    """Equivalent of DiceLoss.forward (PyTorch): 1 - (2*sum(p*t)+s)/(sum(p)+sum(t)+s)."""
    xf = inputs.reshape(-1)
    tf_ = targets.reshape(-1)
    n = xf.shape[0]

    # Pad to a multiple of 8*128 so rows is a multiple of 8 (sublane tile).
    pad = (-n) % (8 * LANE)
    if pad:
        xf = jnp.pad(xf, (0, pad))
        tf_ = jnp.pad(tf_, (0, pad))
    rows = (n + pad) // LANE

    tm = min(MAX_TM, rows)                       # rows per grid step (multiple of 8)
    total_steps = _cdiv(rows, tm)                # number of real row blocks
    num_partials = min(NUM_PARTIALS, total_steps)
    inner_steps = _cdiv(total_steps, num_partials)

    x2 = xf.reshape(rows, LANE)
    t2 = tf_.reshape(rows, LANE)

    def kernel(x_ref, t_ref, acc_ref):
        p_idx = pl.program_id(0)     # parallel partial index
        j_idx = pl.program_id(1)     # serial accumulation index

        @pl.when(j_idx == 0)
        def _init():
            acc_ref[...] = jnp.zeros_like(acc_ref)

        x = x_ref[...].astype(jnp.float32)
        t = t_ref[...].astype(jnp.float32)
        p = jax.nn.sigmoid(x) if use_sigmoid else x

        def _accumulate(pp, tt):
            # (tm,128) -> (tm//8, 8, 128), sum over leading axis: pure VALU adds.
            acc_ref[0, 0] += (pp * tt).reshape(-1, 8, LANE).sum(axis=0)
            acc_ref[0, 1] += pp.reshape(-1, 8, LANE).sum(axis=0)
            acc_ref[0, 2] += tt.reshape(-1, 8, LANE).sum(axis=0)

        b = p_idx * inner_steps + j_idx          # logical row-block index

        @pl.when(b < total_steps - 1)
        def _full_tile():
            _accumulate(p, t)

        @pl.when(b >= total_steps - 1)
        def _tail_tile():
            # Last real block (possibly ragged) and any phantom blocks from the
            # parallel split: mask by global element index.
            # TODO(synk): gidx is int32; fine for < 2^31 elements.
            row = jax.lax.broadcasted_iota(jnp.int32, x.shape, 0)
            lane = jax.lax.broadcasted_iota(jnp.int32, x.shape, 1)
            gidx = (b * tm + row) * LANE + lane
            valid = gidx < n
            _accumulate(jnp.where(valid, p, 0.0), jnp.where(valid, t, 0.0))

    def in_index(pi, ji):
        # Clamp phantom blocks (b >= total_steps) onto the last real block;
        # the in-kernel mask zeroes their contribution.
        return (jnp.minimum(pi * inner_steps + ji, total_steps - 1), 0)

    in_spec = pl.BlockSpec((tm, LANE), in_index)
    out_spec = pl.BlockSpec((1, 3, 8, LANE), lambda pi, ji: (pi, 0, 0, 0))

    partials = pl.pallas_call(
        kernel,
        out_shape=jax.ShapeDtypeStruct((num_partials, 3, 8, LANE), jnp.float32),
        grid_spec=pltpu.PrefetchScalarGridSpec(
            num_scalar_prefetch=0,
            grid=(num_partials, inner_steps),
            in_specs=[in_spec, in_spec],
            out_specs=out_spec,
        ),
        compiler_params=pltpu.CompilerParams(
            dimension_semantics=("parallel", "arbitrary")
        ),
    )(x2, t2)

    sums = partials.sum(axis=(0, 2, 3))          # (3,): [sum(p*t), sum(p), sum(t)]
    inter, s_p, s_t = sums[0], sums[1], sums[2]
    dice = (2.0 * inter + smooth) / (s_p + s_t + smooth)
    return 1.0 - dice


def _reference(inputs, targets, smooth=1.0, use_sigmoid=True):
    p = inputs.reshape(-1).astype(jnp.float32)
    if use_sigmoid:
        p = jax.nn.sigmoid(p)
    t = targets.reshape(-1).astype(jnp.float32)
    inter = jnp.sum(p * t)
    dice = (2.0 * inter + smooth) / (jnp.sum(p) + jnp.sum(t) + smooth)
    return 1.0 - dice


if __name__ == "__main__":
    key = jax.random.PRNGKey(0)
    k1, k2, k3, k4 = jax.random.split(key, 4)

    # Primary test: segmentation-style NCHW logits + binary targets.
    x = jax.random.normal(k1, (2, 4, 16, 16), dtype=jnp.float32)
    t = jax.random.bernoulli(k2, 0.5, (2, 4, 16, 16)).astype(jnp.float32)

    loss = dice_loss(x, t, smooth=1.0)
    jax.block_until_ready(loss)
    ref = _reference(x, t, smooth=1.0)
    assert jnp.allclose(loss, ref, rtol=1e-5, atol=1e-5), (loss, ref)

    # Secondary test: ragged element count (exercises in-kernel tail masking
    # plus the parallel-partials / phantom-block path).
    x2 = jax.random.normal(k3, (3, 5, 7, 11), dtype=jnp.float32)
    t2 = jax.random.bernoulli(k4, 0.3, (3, 5, 7, 11)).astype(jnp.float32)
    loss2 = dice_loss(x2, t2, smooth=1.0)
    jax.block_until_ready(loss2)
    ref2 = _reference(x2, t2, smooth=1.0)
    assert jnp.allclose(loss2, ref2, rtol=1e-5, atol=1e-5), (loss2, ref2)

    print("KERNEL_OK")
</pallas_src>

<mosaic_0001>
module attributes {stable_mosaic.version = 11 : i64} {
  func.func @kernel(%arg0: i32, %arg1: i32, %arg2: memref<16x128xf32, #tpu.memory_space<vmem>>, %arg3: memref<16x128xf32, #tpu.memory_space<vmem>>, %arg4: memref<1x3x8x128xf32, #tpu.memory_space<vmem>>) attributes {dimension_semantics = [#tpu.dimension_semantics<parallel>, #tpu.dimension_semantics<arbitrary>], iteration_bounds = array<i64: 1, 1>, scalar_prefetch = 0 : i64, scratch_operands = 0 : i64, tpu.core_type = #tpu.core_type<tc>, window_params = [{transform_indices = @transform_0, window_bounds = array<i64: 16, 128>}, {transform_indices = @transform_1, window_bounds = array<i64: 16, 128>}, {transform_indices = @transform_2, window_bounds = array<i64: 1, 3, 8, 128>}]} {
    %c0_i32 = arith.constant 0 : i32
    %0 = arith.cmpi eq, %arg1, %c0_i32 : i32
    %1 = arith.extui %0 : i1 to i32
    %c0_i32_0 = arith.constant 0 : i32
    %2 = arith.cmpi ne, %1, %c0_i32_0 : i32
    scf.if %2 {
      %cst_8 = arith.constant 0.000000e+00 : f32
      %18 = vector.broadcast %cst_8 : f32 to vector<1x3x8x128xf32>
      %c0_9 = arith.constant 0 : index
      %c0_10 = arith.constant 0 : index
      %c0_11 = arith.constant 0 : index
      %c0_12 = arith.constant 0 : index
      %19 = vector.load %arg4[%c0_9, %c0_10, %c0_11, %c0_12] : memref<1x3x8x128xf32, #tpu.memory_space<vmem>>, vector<1x3x8x128xf32>
      tpu.vector_store %arg4[%c0_9, %c0_10, %c0_11, %c0_12], %18 {strides = array<i32>} : memref<1x3x8x128xf32, #tpu.memory_space<vmem>>, vector<1x3x8x128xf32>,
    } else {
    }
    %c0 = arith.constant 0 : index
    %c0_1 = arith.constant 0 : index
    %3 = vector.load %arg2[%c0, %c0_1] : memref<16x128xf32, #tpu.memory_space<vmem>>, vector<16x128xf32>
    %c0_2 = arith.constant 0 : index
    %c0_3 = arith.constant 0 : index
    %4 = vector.load %arg3[%c0_2, %c0_3] : memref<16x128xf32, #tpu.memory_space<vmem>>, vector<16x128xf32>
    %5 = arith.negf %3 : vector<16x128xf32>
    %6 = math.exp %5 : vector<16x128xf32>
    %cst = arith.constant 1.000000e+00 : f32
    %7 = vector.broadcast %cst : f32 to vector<16x128xf32>
    %8 = arith.addf %7, %6 : vector<16x128xf32>
    %9 = arith.divf %7, %8 : vector<16x128xf32>
    %c1_i32 = arith.constant 1 : i32
    %10 = arith.muli %arg0, %c1_i32 : i32
    %11 = arith.addi %10, %arg1 : i32
    %c0_i32_4 = arith.constant 0 : i32
    %12 = arith.cmpi slt, %11, %c0_i32_4 : i32
    %13 = arith.extui %12 : i1 to i32
    %c0_i32_5 = arith.constant 0 : i32
    %14 = arith.cmpi ne, %13, %c0_i32_5 : i32
    scf.if %14 {
      %c0_8 = arith.constant 0 : index
      %c0_9 = arith.constant 0 : index
      %c0_10 = arith.constant 0 : index
      %c0_11 = arith.constant 0 : index
      %18 = vector.load %arg4[%c0_8, %c0_9, %c0_10, %c0_11] : memref<1x3x8x128xf32, #tpu.memory_space<vmem>>, vector<1x1x8x128xf32>
      %19 = vector.shape_cast %18 : vector<1x1x8x128xf32> to vector<8x128xf32>
      %20 = arith.mulf %9, %4 : vector<16x128xf32>
      %21 = vector.shape_cast %20 : vector<16x128xf32> to vector<2x8x128xf32>
      %cst_12 = arith.constant dense<0.000000e+00> : vector<8x128xf32>
      %22 = vector.multi_reduction <add>, %21, %cst_12 [0] : vector<2x8x128xf32> to vector<8x128xf32>
      %23 = arith.addf %19, %22 : vector<8x128xf32>
      %c0_13 = arith.constant 0 : index
      %c0_14 = arith.constant 0 : index
      %c0_15 = arith.constant 0 : index
      %c0_16 = arith.constant 0 : index
      %24 = vector.load %arg4[%c0_13, %c0_14, %c0_15, %c0_16] : memref<1x3x8x128xf32, #tpu.memory_space<vmem>>, vector<1x1x8x128xf32>
      %25 = vector.shape_cast %24 : vector<1x1x8x128xf32> to vector<8x128xf32>
      %26 = vector.shape_cast %23 : vector<8x128xf32> to vector<1x1x8x128xf32>
      tpu.vector_store %arg4[%c0_13, %c0_14, %c0_15, %c0_16], %26 {strides = array<i32>} : memref<1x3x8x128xf32, #tpu.memory_space<vmem>>, vector<1x1x8x128xf32>,
      %c0_17 = arith.constant 0 : index
      %c1 = arith.constant 1 : index
      %c0_18 = arith.constant 0 : index
      %c0_19 = arith.constant 0 : index
      %27 = vector.load %arg4[%c0_17, %c1, %c0_18, %c0_19] : memref<1x3x8x128xf32, #tpu.memory_space<vmem>>, vector<1x1x8x128xf32>
      %28 = vector.shape_cast %27 : vector<1x1x8x128xf32> to vector<8x128xf32>
      %29 = vector.shape_cast %9 : vector<16x128xf32> to vector<2x8x128xf32>
      %cst_20 = arith.constant dense<0.000000e+00> : vector<8x128xf32>
      %30 = vector.multi_reduction <add>, %29, %cst_20 [0] : vector<2x8x128xf32> to vector<8x128xf32>
      %31 = arith.addf %28, %30 : vector<8x128xf32>
      %c0_21 = arith.constant 0 : index
      %c1_22 = arith.constant 1 : index
      %c0_23 = arith.constant 0 : index
      %c0_24 = arith.constant 0 : index
      %32 = vector.load %arg4[%c0_21, %c1_22, %c0_23, %c0_24] : memref<1x3x8x128xf32, #tpu.memory_space<vmem>>, vector<1x1x8x128xf32>
      %33 = vector.shape_cast %32 : vector<1x1x8x128xf32> to vector<8x128xf32>
      %34 = vector.shape_cast %31 : vector<8x128xf32> to vector<1x1x8x128xf32>
      tpu.vector_store %arg4[%c0_21, %c1_22, %c0_23, %c0_24], %34 {strides = array<i32>} : memref<1x3x8x128xf32, #tpu.memory_space<vmem>>, vector<1x1x8x128xf32>,
      %c0_25 = arith.constant 0 : index
      %c2 = arith.constant 2 : index
      %c0_26 = arith.constant 0 : index
      %c0_27 = arith.constant 0 : index
      %35 = vector.load %arg4[%c0_25, %c2, %c0_26, %c0_27] : memref<1x3x8x128xf32, #tpu.memory_space<vmem>>, vector<1x1x8x128xf32>
      %36 = vector.shape_cast %35 : vector<1x1x8x128xf32> to vector<8x128xf32>
      %37 = vector.shape_cast %4 : vector<16x128xf32> to vector<2x8x128xf32>
      %cst_28 = arith.constant dense<0.000000e+00> : vector<8x128xf32>
      %38 = vector.multi_reduction <add>, %37, %cst_28 [0] : vector<2x8x128xf32> to vector<8x128xf32>
      %39 = arith.addf %36, %38 : vector<8x128xf32>
      %c0_29 = arith.constant 0 : index
      %c2_30 = arith.constant 2 : index
      %c0_31 = arith.constant 0 : index
      %c0_32 = arith.constant 0 : index
      %40 = vector.load %arg4[%c0_29, %c2_30, %c0_31, %c0_32] : memref<1x3x8x128xf32, #tpu.memory_space<vmem>>, vector<1x1x8x128xf32>
      %41 = vector.shape_cast %40 : vector<1x1x8x128xf32> to vector<8x128xf32>
      %42 = vector.shape_cast %39 : vector<8x128xf32> to vector<1x1x8x128xf32>
      tpu.vector_store %arg4[%c0_29, %c2_30, %c0_31, %c0_32], %42 {strides = array<i32>} : memref<1x3x8x128xf32, #tpu.memory_space<vmem>>, vector<1x1x8x128xf32>,
    } else {
    }
    %c0_i32_6 = arith.constant 0 : i32
    %15 = arith.cmpi sge, %11, %c0_i32_6 : i32
    %16 = arith.extui %15 : i1 to i32
    %c0_i32_7 = arith.constant 0 : i32
    %17 = arith.cmpi ne, %16, %c0_i32_7 : i32
    scf.if %17 {
      %18 = tpu.iota {dimensions = array<i32: 0>} : vector<16x128xi32>
      %19 = tpu.iota {dimensions = array<i32: 1>} : vector<16x128xi32>
      %c16_i32 = arith.constant 16 : i32
      %20 = arith.muli %11, %c16_i32 : i32
      %21 = vector.broadcast %20 : i32 to vector<16x128xi32>
      %22 = arith.addi %21, %18 : vector<16x128xi32>
      %c128_i32 = arith.constant 128 : i32
      %23 = vector.broadcast %c128_i32 : i32 to vector<16x128xi32>
      %24 = arith.muli %22, %23 : vector<16x128xi32>
      %25 = arith.addi %24, %19 : vector<16x128xi32>
      %c2048_i32 = arith.constant 2048 : i32
      %26 = vector.broadcast %c2048_i32 : i32 to vector<16x128xi32>
      %27 = arith.cmpi slt, %25, %26 : vector<16x128xi32>
      %cst_8 = arith.constant 0.000000e+00 : f32
      %28 = vector.broadcast %cst_8 : f32 to vector<16x128xf32>
      %29 = arith.select %27, %9, %28 : vector<16x128xi1>, vector<16x128xf32>
      %cst_9 = arith.constant 0.000000e+00 : f32
      %30 = vector.broadcast %cst_9 : f32 to vector<16x128xf32>
      %31 = arith.select %27, %4, %30 : vector<16x128xi1>, vector<16x128xf32>
      %c0_10 = arith.constant 0 : index
      %c0_11 = arith.constant 0 : index
      %c0_12 = arith.constant 0 : index
      %c0_13 = arith.constant 0 : index
      %32 = vector.load %arg4[%c0_10, %c0_11, %c0_12, %c0_13] : memref<1x3x8x128xf32, #tpu.memory_space<vmem>>, vector<1x1x8x128xf32>
      %33 = vector.shape_cast %32 : vector<1x1x8x128xf32> to vector<8x128xf32>
      %34 = arith.mulf %29, %31 : vector<16x128xf32>
      %35 = vector.shape_cast %34 : vector<16x128xf32> to vector<2x8x128xf32>
      %cst_14 = arith.constant dense<0.000000e+00> : vector<8x128xf32>
      %36 = vector.multi_reduction <add>, %35, %cst_14 [0] : vector<2x8x128xf32> to vector<8x128xf32>
      %37 = arith.addf %33, %36 : vector<8x128xf32>
      %c0_15 = arith.constant 0 : index
      %c0_16 = arith.constant 0 : index
      %c0_17 = arith.constant 0 : index
      %c0_18 = arith.constant 0 : index
      %38 = vector.load %arg4[%c0_15, %c0_16, %c0_17, %c0_18] : memref<1x3x8x128xf32, #tpu.memory_space<vmem>>, vector<1x1x8x128xf32>
      %39 = vector.shape_cast %38 : vector<1x1x8x128xf32> to vector<8x128xf32>
      %40 = vector.shape_cast %37 : vector<8x128xf32> to vector<1x1x8x128xf32>
      tpu.vector_store %arg4[%c0_15, %c0_16, %c0_17, %c0_18], %40 {strides = array<i32>} : memref<1x3x8x128xf32, #tpu.memory_space<vmem>>, vector<1x1x8x128xf32>,
      %c0_19 = arith.constant 0 : index
      %c1 = arith.constant 1 : index
      %c0_20 = arith.constant 0 : index
      %c0_21 = arith.constant 0 : index
      %41 = vector.load %arg4[%c0_19, %c1, %c0_20, %c0_21] : memref<1x3x8x128xf32, #tpu.memory_space<vmem>>, vector<1x1x8x128xf32>
      %42 = vector.shape_cast %41 : vector<1x1x8x128xf32> to vector<8x128xf32>
      %43 = vector.shape_cast %29 : vector<16x128xf32> to vector<2x8x128xf32>
      %cst_22 = arith.constant dense<0.000000e+00> : vector<8x128xf32>
      %44 = vector.multi_reduction <add>, %43, %cst_22 [0] : vector<2x8x128xf32> to vector<8x128xf32>
      %45 = arith.addf %42, %44 : vector<8x128xf32>
      %c0_23 = arith.constant 0 : index
      %c1_24 = arith.constant 1 : index
      %c0_25 = arith.constant 0 : index
      %c0_26 = arith.constant 0 : index
      %46 = vector.load %arg4[%c0_23, %c1_24, %c0_25, %c0_26] : memref<1x3x8x128xf32, #tpu.memory_space<vmem>>, vector<1x1x8x128xf32>
      %47 = vector.shape_cast %46 : vector<1x1x8x128xf32> to vector<8x128xf32>
      %48 = vector.shape_cast %45 : vector<8x128xf32> to vector<1x1x8x128xf32>
      tpu.vector_store %arg4[%c0_23, %c1_24, %c0_25, %c0_26], %48 {strides = array<i32>} : memref<1x3x8x128xf32, #tpu.memory_space<vmem>>, vector<1x1x8x128xf32>,
      %c0_27 = arith.constant 0 : index
      %c2 = arith.constant 2 : index
      %c0_28 = arith.constant 0 : index
      %c0_29 = arith.constant 0 : index
      %49 = vector.load %arg4[%c0_27, %c2, %c0_28, %c0_29] : memref<1x3x8x128xf32, #tpu.memory_space<vmem>>, vector<1x1x8x128xf32>
      %50 = vector.shape_cast %49 : vector<1x1x8x128xf32> to vector<8x128xf32>
      %51 = vector.shape_cast %31 : vector<16x128xf32> to vector<2x8x128xf32>
      %cst_30 = arith.constant dense<0.000000e+00> : vector<8x128xf32>
      %52 = vector.multi_reduction <add>, %51, %cst_30 [0] : vector<2x8x128xf32> to vector<8x128xf32>
      %53 = arith.addf %50, %52 : vector<8x128xf32>
      %c0_31 = arith.constant 0 : index
      %c2_32 = arith.constant 2 : index
      %c0_33 = arith.constant 0 : index
      %c0_34 = arith.constant 0 : index
      %54 = vector.load %arg4[%c0_31, %c2_32, %c0_33, %c0_34] : memref<1x3x8x128xf32, #tpu.memory_space<vmem>>, vector<1x1x8x128xf32>
      %55 = vector.shape_cast %54 : vector<1x1x8x128xf32> to vector<8x128xf32>
      %56 = vector.shape_cast %53 : vector<8x128xf32> to vector<1x1x8x128xf32>
      tpu.vector_store %arg4[%c0_31, %c2_32, %c0_33, %c0_34], %56 {strides = array<i32>} : memref<1x3x8x128xf32, #tpu.memory_space<vmem>>, vector<1x1x8x128xf32>,
    } else {
    }
    return
  }
  func.func @transform_0(%arg0: i32, %arg1: i32) -> (i32, i32) {
    %c1_i32 = arith.constant 1 : i32
    %0 = arith.muli %arg0, %c1_i32 : i32
    %1 = arith.addi %0, %arg1 : i32
    %c0_i32 = arith.constant 0 : i32
    %2 = arith.minsi %1, %c0_i32 : i32
    %c0_i32_0 = arith.constant 0 : i32
    %c0_i32_1 = arith.constant 0 : i32
    return %2, %c0_i32_0 : i32, i32
  }
  func.func @transform_1(%arg0: i32, %arg1: i32) -> (i32, i32) {
    %c1_i32 = arith.constant 1 : i32
    %0 = arith.muli %arg0, %c1_i32 : i32
    %1 = arith.addi %0, %arg1 : i32
    %c0_i32 = arith.constant 0 : i32
    %2 = arith.minsi %1, %c0_i32 : i32
    %c0_i32_0 = arith.constant 0 : i32
    %c0_i32_1 = arith.constant 0 : i32
    return %2, %c0_i32_0 : i32, i32
  }
  func.func @transform_2(%arg0: i32, %arg1: i32) -> (i32, i32, i32, i32) {
    %c0_i32 = arith.constant 0 : i32
    %c0_i32_0 = arith.constant 0 : i32
    %c0_i32_1 = arith.constant 0 : i32
    %c0_i32_2 = arith.constant 0 : i32
    return %arg0, %c0_i32, %c0_i32_0, %c0_i32_1 : i32, i32, i32, i32
  }
}

</mosaic_0001>

<llo_original>
// kernel: tpu_custom_call.1
$region0: #{tpu_custom_call.1}
  #allocation0 [shape = 'u32[]', space=smem, size = 0x4, offset = 0x4, fixed_abs, tag = 'smem constant byte address 0x4 - core index']
  #allocation1 [shape = 'u32[144,128]{1,0:T(1,128)}', space=vmem, size = 0x12000, scoped, tag = 'internal scratch']
  %s0 = inlined_call_operand.hbm [shape: f32[16,128], index: 0, kind: input, shape index: {}]
  %s1 = inlined_call_operand.hbm [shape: f32[16,128], index: 1, kind: input, shape index: {}]
  %s2 = inlined_call_operand.hbm [shape: f32[1,3,8,128], index: 2, kind: output, shape index: {}]
  %s3 = sld [smem:[#allocation0]]
  $region38: #{tpu_custom_call.1} parent=0
    _
  %s5 = ssub.s32 1, %s3
  %s6 = scalar_select 0, %s5, %s3
  $region1: #{tpu_custom_call.1} parent=0
    #allocation2 [shape = 'u8[8192]{0}', space=vmem, size = 0x2000, scoped, tag = 'input window, operand 0, single buffered']
    #allocation3 [shape = 's32[1]{0}', space=sflag, size = 0x4, scoped, tag = 'scoped memory for tpu_custom_call.1']
    #allocation4 [shape = 's32[1]{0}', space=sflag, size = 0x4, scoped, tag = 'scoped memory for tpu_custom_call.1']
    #allocation5 [shape = 'u8[8192]{0}', space=vmem, size = 0x2000, scoped, tag = 'input window, operand 1, single buffered']
    #allocation6 [shape = 's32[1]{0}', space=sflag, size = 0x4, scoped, tag = 'scoped memory for tpu_custom_call.1']
    #allocation7 [shape = 'u8[12288]{0}', space=vmem, size = 0x3000, scoped, tag = 'output window, operand 0, single buffered']
    %7 = vsyncpa [#allocation3], 0
    %8 = vsyncpa [#allocation6], 0
    %9 = vsyncpa [#allocation4], 0
    // Predicated region
    $region2: #{tpu_custom_call.1} parent=1 // pred_check
      _
    $region3: #{tpu_custom_call.1} parent=1 // pred_check_branch
      %11 = sbr.rel (0) target = $region5
    $region4: #{tpu_custom_call.1} parent=1 // pred_region
      %s12 = sadd.s32 0, 0
      %p13 = scmp.lt.s32.totalorder %s12, 0
      %s14 = scalar_select %p13, %s12, 0
      %s15 = smul.u32 2, %s14
      %s17 = ssub.s32 256, 256
      %18 = vsyncadd [#allocation3], %s17
      %s19 = smul.addr %s15, 128
      %s20 = scalar_lea.hbm %s0, %s19
      %s21 = sshll.u32 [#allocation2], 4
      %s22 = int_to_ptr.vmem [resolvable:$true] %s21
      %27 = dma.hbm_to_vmem [thread:$0]  %s20, 256, %s22, [#allocation3], 128, 128, 8
    $region5: #{tpu_custom_call.1} parent=1 // pred_fallthru
      _
    // Predicated region
    $region6: #{tpu_custom_call.1} parent=1 // pred_check
      _
    $region7: #{tpu_custom_call.1} parent=1 // pred_check_branch
      %29 = sbr.rel (0) target = $region9
    $region8: #{tpu_custom_call.1} parent=1 // pred_region
      %s30 = sadd.s32 0, 0
      %p31 = scmp.lt.s32.totalorder %s30, 0
      %s32 = scalar_select %p31, %s30, 0
      %s33 = smul.u32 2, %s32
      %s35 = ssub.s32 256, 256
      %36 = vsyncadd [#allocation6], %s35
      %s37 = smul.addr %s33, 128
      %s38 = scalar_lea.hbm %s1, %s37
      %s39 = sshll.u32 [#allocation5], 4
      %s40 = int_to_ptr.vmem [resolvable:$true] %s39
      %45 = dma.hbm_to_vmem [thread:$0]  %s38, 256, %s40, [#allocation6], 128, 128, 8
    $region9: #{tpu_custom_call.1} parent=1 // pred_fallthru
      _
    // Predicated region
    $region10: #{tpu_custom_call.1} parent=1 // pred_check
      _
    $region11: #{tpu_custom_call.1} parent=1 // pred_check_branch
      %47 = sbr.rel (0) target = $region13
    $region12: #{tpu_custom_call.1} parent=1 // pred_region
      %48 = dma.done [#allocation3], 256
    $region13: #{tpu_custom_call.1} parent=1 // pred_fallthru
      _
    // Predicated region
    $region14: #{tpu_custom_call.1} parent=1 // pred_check
      _
    $region15: #{tpu_custom_call.1} parent=1 // pred_check_branch
      %50 = sbr.rel (0) target = $region17
    $region16: #{tpu_custom_call.1} parent=1 // pred_region
      %51 = dma.done [#allocation6], 256
    $region17: #{tpu_custom_call.1} parent=1 // pred_fallthru
      _
    %s52 = sadd.s32 0, 0
    %p53 = scmp.lt.s32.totalorder %s52, 0
    %s54 = scalar_select %p53, %s52, 0
    %s55 = smul.u32 2, %s54
    %s56 = sadd.s32 0, 0
    %p57 = scmp.lt.s32.totalorder %s56, 0
    %s58 = scalar_select %p57, %s56, 0
    %s59 = smul.u32 2, %s58
    %p60 = scmp.eq.s32.totalorder 0, 0
    // Predicated region
    $region18: #{tpu_custom_call.1} parent=1 // pred_check
      %p61 = pneg %p60
    $region19: #{tpu_custom_call.1} parent=1 // pred_check_branch
      %63 = sbr.rel (%p61) target = $region21
    $region20: #{tpu_custom_call.1} parent=1 // pred_region
      %64 = vst [vmem:[#allocation7] sm:$0xff] 0.0
      %65 = vst [vmem:[#allocation7 + $0x8] sm:$0xff] 0.0
      %66 = vst [vmem:[#allocation7 + $0x10] sm:$0xff] 0.0
    $region21: #{tpu_custom_call.1} parent=1 // pred_fallthru
      _
    %v67 = vld [vmem:[#allocation2] sm:$0xff]
    %v68 = vld [vmem:[#allocation2 + $0x8] sm:$0xff]
    %v69 = vld [vmem:[#allocation5] sm:$0xff]
    %v70 = vld [vmem:[#allocation5 + $0x8] sm:$0xff]
    %v71 = vxor.u32 %v67, 2147483648
    %v72 = vxor.u32 %v68, 2147483648
    %v73 = vmul.f32 %v71, 1.442695
    %v74 = vpow.pop %v73
    %v75 = vmul.f32 %v72, 1.442695
    %v76 = vpow.pop %v75
    %v77 = vadd.f32 %v74, 1.0
    %v78 = vadd.f32 %v76, 1.0
    %v79 = vrcp.pop %v77
    %v80 = vmul.f32 1.0, %v79
    %v81 = vrcp.pop %v78
    %v82 = vmul.f32 1.0, %v81
    %s83 = sadd.s32 0, 0
    %p84 = scmp.lt.s32.totalorder %s83, 0
    // Predicated region
    $region22: #{tpu_custom_call.1} parent=1 // pred_check
      %p85 = pneg %p84
    $region23: #{tpu_custom_call.1} parent=1 // pred_check_branch
      %87 = sbr.rel (%p85) target = $region25
    $region24: #{tpu_custom_call.1} parent=1 // pred_region
      %v88 = vld [vmem:[#allocation7] sm:$0xff]
      %v89 = vmul.f32 %v80, %v69
      %v90 = vmul.f32 %v82, %v70
      %v91 = vadd.f32 %v89, %v90
      %v92 = vadd.f32 %v88, %v91
      %93 = vst [vmem:[#allocation7] sm:$0xff] %v92
      %s94 = scalar_lea.vmem [#allocation7], 8
      %v95 = vld [vmem:[%s94] sm:$0xff]
      %v96 = vadd.f32 %v80, %v82
      %v97 = vadd.f32 %v95, %v96
      %98 = vst [vmem:[%s94] sm:$0xff] %v97
      %s99 = scalar_lea.vmem [#allocation7], 16
      %v100 = vld [vmem:[%s99] sm:$0xff]
      %v101 = vadd.f32 %v69, %v70
      %v102 = vadd.f32 %v100, %v101
      %103 = vst [vmem:[%s99] sm:$0xff] %v102
    $region25: #{tpu_custom_call.1} parent=1 // pred_fallthru
      _
    %p104 = scmp.ge.s32.totalorder %s83, 0
    // Predicated region
    $region26: #{tpu_custom_call.1} parent=1 // pred_check
      %p105 = pneg %p104
    $region27: #{tpu_custom_call.1} parent=1 // pred_check_branch
      %107 = sbr.rel (%p105) target = $region29
    $region28: #{tpu_custom_call.1} parent=1 // pred_region
      %v108 = vlaneseq
      %v109 = vshrl.u32 %v108, 7
      %v110 = vadd.s32 %v109, 8
      %v111 = vlaneseq
      %v112 = vand.u32 %v111, 127
      %s113 = smul.u32 %s83, 16
      %v114 = vstv %s113
      %v115 = vadd.s32 %v114, %v109
      %v116 = vadd.s32 %v114, %v110
      %v117 = vmul.u32 %v115, 128
      %v118 = vmul.u32 %v116, 128
      %v119 = vadd.s32 %v117, %v112
      %v120 = vadd.s32 %v118, %v112
      %vm121 = vcmp.lt.s32.totalorder %v119, 2048
      %vm122 = vcmp.lt.s32.totalorder %v120, 2048
      %v123 = vsel %vm121, %v80, 0.0
      %v124 = vsel %vm122, %v82, 0.0
      %v125 = vsel %vm121, %v69, 0.0
      %v126 = vsel %vm122, %v70, 0.0
      %v127 = vld [vmem:[#allocation7] sm:$0xff]
      %v128 = vmul.f32 %v123, %v125
      %v129 = vmul.f32 %v124, %v126
      %v130 = vadd.f32 %v128, %v129
      %v131 = vadd.f32 %v127, %v130
      %132 = vst [vmem:[#allocation7] sm:$0xff] %v131
      %s133 = scalar_lea.vmem [#allocation7], 8
      %v134 = vld [vmem:[%s133] sm:$0xff]
      %v135 = vadd.f32 %v123, %v124
      %v136 = vadd.f32 %v134, %v135
      %137 = vst [vmem:[%s133] sm:$0xff] %v136
      %s138 = scalar_lea.vmem [#allocation7], 16
      %v139 = vld [vmem:[%s138] sm:$0xff]
      %v140 = vadd.f32 %v125, %v126
      %v141 = vadd.f32 %v139, %v140
      %142 = vst [vmem:[%s138] sm:$0xff] %v141
    $region29: #{tpu_custom_call.1} parent=1 // pred_fallthru
      _
    // Predicated region
    $region30: #{tpu_custom_call.1} parent=1 // pred_check
      _
    $region31: #{tpu_custom_call.1} parent=1 // pred_check_branch
      %144 = sbr.rel (0) target = $region33
    $region32: #{tpu_custom_call.1} parent=1 // pred_region
      %s146 = ssub.s32 384, 384
      %147 = vsyncadd [#allocation4], %s146
      %s148 = sshll.u32 [#allocation7], 4
      %s149 = int_to_ptr.vmem [resolvable:$true] %s148
      %154 = dma.vmem_to_hbm [thread:$0]  %s149, 384, %s2, [#allocation4], 128, 128, 8
    $region33: #{tpu_custom_call.1} parent=1 // pred_fallthru
      _
    // Predicated region
    $region34: #{tpu_custom_call.1} parent=1 // pred_check
      _
    $region35: #{tpu_custom_call.1} parent=1 // pred_check_branch
      %156 = sbr.rel (0) target = $region37
    $region36: #{tpu_custom_call.1} parent=1 // pred_region
      %157 = dma.done [#allocation4], 384
    $region37: #{tpu_custom_call.1} parent=1 // pred_fallthru
      _
    %158 = vsyncpa [#allocation3], 1
    %159 = vsyncpa [#allocation6], 1
    %160 = vsyncpa [#allocation4], 1

</llo_original>
